<compile_context>
chip_gen: v7x
topology: tpu7x:2x2x1
jax: 0.10.0
libtpu: 0.0.40
codegen_flags: <defaults>
</compile_context>

<pallas_src>
import jax
import jax.numpy as jnp
from jax.experimental import pallas as pl
from jax.experimental.pallas import tpu as pltpu

_EPS = 1e-5


# ------------------------- VMEM-aware tiling helpers -------------------------

def _vmem_capacity_bytes():
    try:
        cap = getattr(pltpu.get_tpu_info(), "vmem_capacity_bytes", None)
        if cap:
            return int(cap)
    except Exception:
        pass
    try:
        kind = jax.devices()[0].device_kind.lower()
        if "v7" in kind:
            return 64 * 1024 * 1024          # v7x: 64 MiB per TensorCore
    except Exception:
        pass
    return 128 * 1024 * 1024                 # v5e / v6e default


_VMEM_CAP = _vmem_capacity_bytes()
_VMEM_LIMIT = int(min(_VMEM_CAP * 3 // 4, 96 * 1024 * 1024))


def _cparams():
    return pltpu.CompilerParams(dimension_semantics=("parallel",),
                                vmem_limit_bytes=_VMEM_LIMIT)


def _round8_down(v):
    return max(8, v - v % 8)


def _pick_tile(rows, bytes_per_row):
    """Row-tile size: biggest multiple of 8 that fits the VMEM budget (explicit
    2x double-buffer factor), targeting >=4 grid steps once tiles pass ~512
    rows so both v7x TensorCores get >=2 pipelined steps each."""
    budget = _VMEM_LIMIT // 2
    cap = budget // max(1, 2 * bytes_per_row)
    cap = min(_round8_down(cap), 8192)
    want = max(512, -(-rows // 4))
    tm = _round8_down(min(cap, want))
    if tm >= rows:
        tm = rows + ((-rows) % 8)            # single (possibly padded) block
    return max(8, tm)


def _pack_factor(m, c_out):
    """Largest p (power of two, 128 % c_out == 0, m % p == 0) so that an
    (m, c) array can be viewed lane-densely as (m/p, p*c)."""
    if c_out <= 0 or 128 % c_out != 0:
        return 1
    p = 128 // c_out
    while p > 1 and m % p != 0:
        p //= 2
    return p


def _block_diag(w, p):
    """(k, n) -> (p*k, p*n) block-diagonal with p copies of w."""
    if p == 1:
        return w
    k, n = w.shape
    eye = jnp.eye(p, dtype=w.dtype)
    return (eye[:, None, :, None] * w[None, :, None, :]).reshape(p * k, p * n)


def _pad_rows(a, pad):
    if pad == 0:
        return a
    return jnp.concatenate(
        [a, jnp.zeros((pad,) + a.shape[1:], a.dtype)], axis=0)


def _row_spec(tm, n):
    return pl.BlockSpec((tm, n), lambda i: (i, 0))


def _full_spec(shape):
    return pl.BlockSpec(shape, lambda i: (0, 0))


# ----------------------------- Pallas kernels -----------------------------

def _mm_bias_kernel(x_ref, w_ref, b_ref, o_ref):
    # out = x @ w + b            (lane-dense block-diagonal 1x1x1 conv)
    o_ref[...] = (jnp.dot(x_ref[...], w_ref[...],
                          preferred_element_type=jnp.float32) + b_ref[...])


def _mm_bias_relu_kernel(x_ref, w_ref, b_ref, o_ref):
    # out = relu(x @ w + b)      (BN1 + combine-conv + BN2 + ReLU folded)
    o_ref[...] = jnp.maximum(
        jnp.dot(x_ref[...], w_ref[...],
                preferred_element_type=jnp.float32) + b_ref[...], 0.0)


def _theta_att_kernel(xp_ref, phi_ref, wt_ref, pool_ref, bpsi_ref, o_ref):
    # theta(x) (bias-less strided conv as packed patch matmul) fused with
    # sigmoid(psi(relu(theta + phi))); psi is a block-diagonal pooling matmul.
    theta = jnp.dot(xp_ref[...], wt_ref[...], preferred_element_type=jnp.float32)
    f = jnp.maximum(theta + phi_ref[...], 0.0)
    psi = (jnp.dot(f, pool_ref[...], preferred_element_type=jnp.float32)
           + bpsi_ref[...])
    o_ref[...] = jax.nn.sigmoid(psi)


def _gated_mm_stats_kernel(x_ref, s_ref, r_ref, w_ref, b_ref,
                           o_ref, st_ref, gram_ref):
    # y = attention * x ; wy = y @ W + b ; per-tile column sums + Gram matrix
    # (single store each) so BN1/BN2 stats never re-read wy from HBM.
    s_b = jnp.dot(s_ref[...], r_ref[...], preferred_element_type=jnp.float32)
    y = x_ref[...] * s_b
    wy = jnp.dot(y, w_ref[...], preferred_element_type=jnp.float32) + b_ref[...]
    o_ref[...] = wy
    colsum = jnp.sum(wy, axis=0, keepdims=True)
    st_ref[...] = jnp.broadcast_to(colsum, st_ref.shape)      # host reads row 0
    gram_ref[...] = jax.lax.dot_general(
        wy, wy, (((0,), (0,)), ((), ())), preferred_element_type=jnp.float32)


# --------------------------- pallas_call wrappers ---------------------------

def _conv1x1_impl(x, w, b, kernel):
    m, cin = x.shape
    cout = w.shape[1]
    p = _pack_factor(m, cout)
    rows = m // p
    wi, wo = p * cin, p * cout
    xd = x.reshape(rows, wi)
    w_bd = _block_diag(w, p)
    b_t = jnp.tile(b.reshape(1, cout), (1, p))
    tm = _pick_tile(rows, 4 * (wi + wo))
    grid = -(-rows // tm)
    xd = _pad_rows(xd, grid * tm - rows)
    out = pl.pallas_call(
        kernel,
        out_shape=jax.ShapeDtypeStruct((grid * tm, wo), jnp.float32),
        grid=(grid,),
        in_specs=[_row_spec(tm, wi), _full_spec((wi, wo)), _full_spec((1, wo))],
        out_specs=_row_spec(tm, wo),
        compiler_params=_cparams(),
        cost_estimate=pl.CostEstimate(
            flops=2 * grid * tm * wi * wo, transcendentals=0,
            bytes_accessed=4 * (grid * tm * (wi + wo) + wi * wo + wo)),
    )(xd, w_bd, b_t)
    return out[:rows].reshape(m, cout)


def conv1x1(x, w, b):
    return _conv1x1_impl(x, w, b, _mm_bias_kernel)


def conv1x1_relu(x, w, b):
    return _conv1x1_impl(x, w, b, _mm_bias_relu_kernel)


def theta_attention(xp, phi_up, w_theta, w_psi, b_psi):
    """sigmoid(psi(relu(theta(x) + phi_up))) on the sub-sampled grid.
    xp: (Mc, kd*kh*kw*C) patches, phi_up: (Mc, Ci).  Returns (Mc,)."""
    mc, k = xp.shape
    ci = w_theta.shape[1]
    q = _pack_factor(mc, ci)
    rows = mc // q
    wi, wmid = q * k, q * ci
    xd = xp.reshape(rows, wi)
    pd = phi_up.reshape(rows, wmid)
    wt_bd = _block_diag(w_theta, q)                     # (wi, wmid)
    pool = _block_diag(w_psi.reshape(ci, 1), q)         # (wmid, q)
    bps = jnp.tile(b_psi.reshape(1, 1), (1, q))
    tm = _pick_tile(rows, 4 * (wi + wmid + q))
    grid = -(-rows // tm)
    pad = grid * tm - rows
    xd = _pad_rows(xd, pad)
    pd = _pad_rows(pd, pad)
    out = pl.pallas_call(
        _theta_att_kernel,
        out_shape=jax.ShapeDtypeStruct((grid * tm, q), jnp.float32),
        grid=(grid,),
        in_specs=[_row_spec(tm, wi), _row_spec(tm, wmid),
                  _full_spec((wi, wmid)), _full_spec((wmid, q)),
                  _full_spec((1, q))],
        out_specs=_row_spec(tm, q),
        compiler_params=_cparams(),
        cost_estimate=pl.CostEstimate(
            flops=(2 * grid * tm * wi * wmid + 2 * grid * tm * wmid * q
                   + 2 * grid * tm * wmid),
            transcendentals=grid * tm * q,
            bytes_accessed=4 * (grid * tm * (wi + wmid + q)
                                + wi * wmid + wmid * q + q)),
    )(xd, pd, wt_bd, pool, bps)
    return out[:rows].reshape(mc)


def gated_conv_stats(x, s, w, b):
    """wy = (s*x) @ W + b plus its exact column sums S1 and Gram matrix G
    (both folded back to channel space), computed in one lane-dense pass."""
    m, cin = x.shape
    cout = w.shape[1]
    p = _pack_factor(m, cout)
    rows = m // p
    wi, wo = p * cin, p * cout
    xd = x.reshape(rows, wi)
    sd = s.reshape(rows, p)
    w_bd = _block_diag(w, p)
    b_t = jnp.tile(b.reshape(1, cout), (1, p))
    r_bc = jnp.repeat(jnp.eye(p, dtype=x.dtype), cin, axis=1)   # (p, wi)
    tm = _pick_tile(rows, 4 * (wi + p + wo))
    grid = -(-rows // tm)
    pad = grid * tm - rows
    xd = _pad_rows(xd, pad)
    sd = _pad_rows(sd, pad)
    wy_d, st, gram = pl.pallas_call(
        _gated_mm_stats_kernel,
        out_shape=(jax.ShapeDtypeStruct((grid * tm, wo), jnp.float32),
                   jax.ShapeDtypeStruct((8 * grid, wo), jnp.float32),
                   jax.ShapeDtypeStruct((wo * grid, wo), jnp.float32)),
        grid=(grid,),
        in_specs=[_row_spec(tm, wi), _row_spec(tm, p),
                  _full_spec((p, wi)), _full_spec((wi, wo)),
                  _full_spec((1, wo))],
        out_specs=[_row_spec(tm, wo),
                   pl.BlockSpec((8, wo), lambda i: (i, 0)),
                   pl.BlockSpec((wo, wo), lambda i: (i, 0))],
        compiler_params=_cparams(),
        cost_estimate=pl.CostEstimate(
            flops=(2 * grid * tm * (p * wi + wi * wo + wo * wo)
                   + 2 * grid * tm * wi),
            transcendentals=0,
            bytes_accessed=4 * (grid * tm * (wi + p + wo)
                                + p * wi + wi * wo + wo
                                + grid * (8 + wo) * wo)),
    )(xd, sd, r_bc, w_bd, b_t)
    # Fold dense-lane statistics back to channel space.
    s1 = (st.reshape(grid, 8, wo)[:, 0, :].sum(axis=0)
          .reshape(p, cout).sum(axis=0))
    gd = gram.reshape(grid, wo, wo).sum(axis=0)
    g_c = jnp.einsum('acad->cd', gd.reshape(p, cout, p, cout))
    if pad:
        # Zero-padded rows still pick up the bias (wy == b); remove exactly.
        npos = pad * p
        s1 = s1 - npos * b
        g_c = g_c - npos * jnp.outer(b, b)
    wy = wy_d[:rows].reshape(m, cout)
    return wy, s1, g_c


# ------------------------------- JAX glue -------------------------------

def _fold_bn_tail(s1, gram, n, gamma1, beta1, w_c, b_c, gamma2, beta2,
                  eps=_EPS):
    """Fold BN1(wy) -> combine-conv -> BN2 into a single (W, b) affine, using
    training-mode batch statistics derived from sum(wy) and wy^T @ wy.
    (Variance uses E[x^2]-E[x]^2 in f32, clamped at 0 -- same formulation as
    the unfused reference path.)"""
    mean1 = s1 / n
    var1 = jnp.maximum(jnp.diag(gram) / n - mean1 * mean1, 0.0)
    scale1 = gamma1 / jnp.sqrt(var1 + eps)
    shift1 = beta1 - mean1 * scale1
    w1 = scale1[:, None] * w_c               # BN1 folded into combine conv
    b1 = shift1 @ w_c + b_c
    mean_z = mean1 @ w1 + b1                 # batch stats of z, analytically
    m2 = gram / n
    ez2 = (jnp.einsum('ik,ij,jk->k', w1, m2, w1)
           + 2.0 * b1 * (mean1 @ w1) + b1 * b1)
    var2 = jnp.maximum(ez2 - mean_z * mean_z, 0.0)
    scale2 = gamma2 / jnp.sqrt(var2 + eps)
    shift2 = beta2 - mean_z * scale2
    w2 = w1 * scale2[None, :]                # BN2 + ReLU-ready affine
    b2 = b1 * scale2 + shift2
    return w2, b2


def _trilinear_resize(x, out_spatial):
    """x: (B, D, H, W, C) channels-last; align_corners=False trilinear."""
    b, d, h, w, c = x.shape
    do, ho, wo = out_spatial

    def axis_coords(n_in, n_out):
        if n_in == n_out:
            idx = jnp.arange(n_out)
            return idx, idx, jnp.zeros((n_out,), jnp.float32)
        scale = n_in / n_out
        cc = (jnp.arange(n_out, dtype=jnp.float32) + 0.5) * scale - 0.5
        cc = jnp.clip(cc, 0.0, n_in - 1)
        lo = jnp.floor(cc).astype(jnp.int32)
        hi = jnp.minimum(lo + 1, n_in - 1)
        return lo, hi, cc - lo.astype(jnp.float32)

    d0, d1, fd = axis_coords(d, do)
    h0, h1, fh = axis_coords(h, ho)
    w0, w1, fw = axis_coords(w, wo)

    xd = (x[:, d0] * (1.0 - fd)[None, :, None, None, None]
          + x[:, d1] * fd[None, :, None, None, None])
    xh = (xd[:, :, h0] * (1.0 - fh)[None, None, :, None, None]
          + xd[:, :, h1] * fh[None, None, :, None, None])
    xw = (xh[:, :, :, w0] * (1.0 - fw)[None, None, None, :, None]
          + xh[:, :, :, w1] * fw[None, None, None, :, None])
    return xw


def init_params(key, in_size, gate_size, inter_size, ssf):
    """Deterministic kaiming-style init matching the module's layer shapes."""
    kd, kh, kw = ssf
    keys = jax.random.split(key, 8)

    def kaiming(k, shape, fan_in):
        return jax.random.normal(k, shape, jnp.float32) * jnp.sqrt(2.0 / fan_in)

    p = {}
    # GridAttentionBlock3D.theta : Conv3d(in, inter, k=ssf, stride=ssf, bias=False)
    p['w_theta'] = kaiming(keys[0], (kd * kh * kw * in_size, inter_size),
                           in_size * kd * kh * kw)
    # .phi : Conv3d(gate, inter, 1, bias=True)
    p['w_phi'] = kaiming(keys[1], (gate_size, inter_size), gate_size)
    p['b_phi'] = jnp.zeros((inter_size,), jnp.float32)
    # .psi : Conv3d(inter, 1, 1, bias=True)
    p['w_psi'] = kaiming(keys[2], (inter_size, 1), inter_size)
    p['b_psi'] = jnp.zeros((1,), jnp.float32)
    # .W : Conv3d(in, in, 1) + BatchNorm3d(in)
    p['w_W'] = kaiming(keys[3], (in_size, in_size), in_size)
    p['b_W'] = jnp.zeros((in_size,), jnp.float32)
    p['gamma_W'] = 1.0 + 0.02 * jax.random.normal(keys[4], (in_size,), jnp.float32)
    p['beta_W'] = jnp.zeros((in_size,), jnp.float32)
    # combine_gates : Conv3d(in, in, 1) + BatchNorm3d(in) + ReLU
    p['w_c'] = kaiming(keys[5], (in_size, in_size), in_size)
    p['b_c'] = jnp.zeros((in_size,), jnp.float32)
    p['gamma_c'] = 1.0 + 0.02 * jax.random.normal(keys[6], (in_size,), jnp.float32)
    p['beta_c'] = jnp.zeros((in_size,), jnp.float32)
    return p


def multi_attention_block(x_ncdhw, g_ncdhw, params, ssf):
    """Forward pass of MultiAttentionBlock. Returns (combined, attention)."""
    b, c, d, h, w = x_ncdhw.shape
    _, cg, dg, hg, wg = g_ncdhw.shape
    kd, kh, kw = ssf
    dt, ht, wt = d // kd, h // kh, w // kw
    ci = params['w_phi'].shape[1]
    m = b * d * h * w
    mc = b * dt * ht * wt
    mg = b * dg * hg * wg

    x_cl = jnp.transpose(x_ncdhw, (0, 2, 3, 4, 1))     # NDHWC
    g_cl = jnp.transpose(g_ncdhw, (0, 2, 3, 4, 1))

    # ---- phi(g) (lane-dense Pallas matmul) + trilinear upsample to theta grid
    phi_g = conv1x1(g_cl.reshape(mg, cg), params['w_phi'], params['b_phi'])
    phi_up = _trilinear_resize(phi_g.reshape(b, dg, hg, wg, ci), (dt, ht, wt))
    phi_up = phi_up.reshape(mc, ci)

    # ---- theta patches (strided conv == non-overlapping patch matmul)
    # TODO(synk): gather the kd*kh*kw taps inside the kernel (strided DMA from
    # an ANY-space x) to avoid materializing this reorganized HBM copy of x.
    xp = x_cl[:, :dt * kd, :ht * kh, :wt * kw, :]
    xp = xp.reshape(b, dt, kd, ht, kh, wt, kw, c)
    xp = jnp.transpose(xp, (0, 1, 3, 5, 2, 4, 6, 7)).reshape(mc, kd * kh * kw * c)

    # ---- fused theta-conv + relu(theta+phi) + psi + sigmoid (Pallas)
    sigm = theta_attention(xp, phi_up, params['w_theta'],
                           params['w_psi'], params['b_psi'])

    # ---- upsample attention map to input resolution (XLA glue)
    # TODO(synk): fuse this trilinear gather into the gated kernel via
    # scalar-prefetched interpolation indices to drop the (M,) round trip.
    sigm_full = _trilinear_resize(sigm.reshape(b, dt, ht, wt, 1), (d, h, w))
    attention = jnp.transpose(sigm_full, (0, 4, 1, 2, 3))      # (B,1,D,H,W)

    # ---- y = attention * x ; W_y = Conv1x1(y) ; sum + Gram moments (one pass)
    wy, s1, gram = gated_conv_stats(x_cl.reshape(m, c),
                                    sigm_full.reshape(m),
                                    params['w_W'], params['b_W'])

    # ---- fold BN1 + combine-conv + BN2 + ReLU into one lane-dense matmul
    w2, b2 = _fold_bn_tail(s1, gram, m,
                           params['gamma_W'], params['beta_W'],
                           params['w_c'], params['b_c'],
                           params['gamma_c'], params['beta_c'])
    out = conv1x1_relu(wy, w2, b2)

    out_ncdhw = jnp.transpose(out.reshape(b, d, h, w, c), (0, 4, 1, 2, 3))
    return out_ncdhw, attention


# --------------------------------- main ---------------------------------

if __name__ == "__main__":
    key = jax.random.PRNGKey(0)
    in_size, gate_size, inter_size = 8, 16, 8
    ssf = (2, 2, 2)
    B, D, H, W = 2, 8, 8, 8
    Dg, Hg, Wg = 4, 4, 4          # gating signal at half spatial resolution

    kx, kg, kp = jax.random.split(key, 3)
    x = jax.random.normal(kx, (B, in_size, D, H, W), jnp.float32)
    g = jax.random.normal(kg, (B, gate_size, Dg, Hg, Wg), jnp.float32)
    params = init_params(kp, in_size, gate_size, inter_size, ssf)

    out, att = multi_attention_block(x, g, params, ssf)
    out = jax.block_until_ready(out)
    att = jax.block_until_ready(att)

    assert out.shape == (B, in_size, D, H, W)
    assert att.shape == (B, 1, D, H, W)
    assert bool(jnp.all(out >= 0.0))                      # ReLU output
    assert bool(jnp.all((att >= 0.0) & (att <= 1.0)))     # sigmoid attention
    print("KERNEL_OK")
</pallas_src>

<mosaic_0001>
module attributes {stable_mosaic.version = 11 : i64} {
  func.func @_mm_bias_kernel(%arg0: i32, %arg1: memref<8x256xf32, #tpu.memory_space<vmem>>, %arg2: memref<256x128xf32, #tpu.memory_space<vmem>>, %arg3: memref<1x128xf32, #tpu.memory_space<vmem>>, %arg4: memref<8x128xf32, #tpu.memory_space<vmem>>) attributes {dimension_semantics = [#tpu.dimension_semantics<parallel>], iteration_bounds = array<i64: 1>, scalar_prefetch = 0 : i64, scratch_operands = 0 : i64, tpu.core_type = #tpu.core_type<tc>, window_params = [{transform_indices = @transform_0, window_bounds = array<i64: 8, 256>}, {pipeline_mode = #tpu.pipeline_mode<synchronous>, transform_indices = @transform_1, window_bounds = array<i64: 256, 128>}, {pipeline_mode = #tpu.pipeline_mode<synchronous>, transform_indices = @transform_2, window_bounds = array<i64: 1, 128>}, {transform_indices = @transform_3, window_bounds = array<i64: 8, 128>}]} {
    %c0 = arith.constant 0 : index
    %c0_0 = arith.constant 0 : index
    %0 = vector.load %arg1[%c0, %c0_0] : memref<8x256xf32, #tpu.memory_space<vmem>>, vector<8x256xf32>
    %c0_1 = arith.constant 0 : index
    %c0_2 = arith.constant 0 : index
    %1 = vector.load %arg2[%c0_1, %c0_2] : memref<256x128xf32, #tpu.memory_space<vmem>>, vector<256x128xf32>
    %cst = arith.constant dense<0.000000e+00> : vector<8x128xf32>
    %2 = tpu.matmul %0, %1, %cst {dimension_numbers = #tpu.dot_dimension_numbers<[1], [0], [0], [1], [0, 0, 1, 1], [], []>} : vector<8x256xf32>, vector<256x128xf32>, vector<8x128xf32> -> vector<8x128xf32>
    %c0_3 = arith.constant 0 : index
    %c0_4 = arith.constant 0 : index
    %3 = vector.load %arg3[%c0_3, %c0_4] : memref<1x128xf32, #tpu.memory_space<vmem>>, vector<1x128xf32>
    %4 = vector.broadcast %3 : vector<1x128xf32> to vector<8x128xf32>
    %5 = arith.addf %2, %4 : vector<8x128xf32>
    %c0_5 = arith.constant 0 : index
    %c0_6 = arith.constant 0 : index
    %6 = vector.load %arg4[%c0_5, %c0_6] : memref<8x128xf32, #tpu.memory_space<vmem>>, vector<8x128xf32>
    tpu.vector_store %arg4[%c0_5, %c0_6], %5 {strides = array<i32>} : memref<8x128xf32, #tpu.memory_space<vmem>>, vector<8x128xf32>,
    return
  }
  func.func @transform_0(%arg0: i32) -> (i32, i32) {
    %c0_i32 = arith.constant 0 : i32
    %c0_i32_0 = arith.constant 0 : i32
    return %arg0, %c0_i32 : i32, i32
  }
  func.func @transform_1(%arg0: i32) -> (i32, i32) {
    %c0_i32 = arith.constant 0 : i32
    %c0_i32_0 = arith.constant 0 : i32
    %c0_i32_1 = arith.constant 0 : i32
    return %c0_i32, %c0_i32_0 : i32, i32
  }
  func.func @transform_2(%arg0: i32) -> (i32, i32) {
    %c0_i32 = arith.constant 0 : i32
    %c0_i32_0 = arith.constant 0 : i32
    %c0_i32_1 = arith.constant 0 : i32
    return %c0_i32, %c0_i32_0 : i32, i32
  }
  func.func @transform_3(%arg0: i32) -> (i32, i32) {
    %c0_i32 = arith.constant 0 : i32
    %c0_i32_0 = arith.constant 0 : i32
    return %arg0, %c0_i32 : i32, i32
  }
}

</mosaic_0001>

<llo_original>
// kernel: tpu_custom_call.1
$region0: #{tpu_custom_call.1}
  #allocation0 [shape = 'u32[]', space=smem, size = 0x4, offset = 0x4, fixed_abs, tag = 'smem constant byte address 0x4 - core index']
  #allocation1 [shape = 'u32[144,128]{1,0:T(1,128)}', space=vmem, size = 0x12000, scoped, tag = 'internal scratch']
  %s0 = inlined_call_operand.hbm [shape: f32[8,256], index: 0, kind: input, shape index: {}]
  %s1 = inlined_call_operand.hbm [shape: f32[256,128], index: 1, kind: input, shape index: {}]
  %s2 = inlined_call_operand.hbm [shape: f32[1,128], index: 2, kind: input, shape index: {}]
  %s3 = inlined_call_operand.hbm [shape: f32[8,128], index: 3, kind: output, shape index: {}]
  %s4 = sld [smem:[#allocation0]]
  $region34: #{tpu_custom_call.1} parent=0
    _
  %s6 = ssub.s32 1, %s4
  %s7 = scalar_select 0, %s6, %s4
  $region1: #{tpu_custom_call.1} parent=0
    #allocation2 [shape = 'u8[8192]{0}', space=vmem, size = 0x2000, scoped, tag = 'input window, operand 0, single buffered']
    #allocation3 [shape = 's32[1]{0}', space=sflag, size = 0x4, scoped, tag = 'scoped memory for tpu_custom_call.1']
    #allocation4 [shape = 's32[1]{0}', space=sflag, size = 0x4, scoped, tag = 'scoped memory for tpu_custom_call.1']
    #allocation5 [shape = 'u8[131072]{0}', space=vmem, size = 0x20000, scoped, tag = 'input window, operand 1, single buffered']
    #allocation6 [shape = 's32[1]{0}', space=sflag, size = 0x4, scoped, tag = 'scoped memory for tpu_custom_call.1']
    #allocation7 [shape = 'u8[512]{0}', space=vmem, size = 0x400, scoped, tag = 'input window, operand 2, single buffered']
    #allocation8 [shape = 'u8[4096]{0}', space=vmem, size = 0x1000, scoped, tag = 'output window, operand 0, single buffered']
    %8 = vsyncpa [#allocation3], 0
    %9 = vsyncpa [#allocation6], 0
    %10 = vsyncpa [#allocation4], 0
    // Predicated region
    $region2: #{tpu_custom_call.1} parent=1 // pred_check
      _
    $region3: #{tpu_custom_call.1} parent=1 // pred_check_branch
      %12 = sbr.rel (0) target = $region5
    $region4: #{tpu_custom_call.1} parent=1 // pred_region
      %s14 = ssub.s32 256, 256
      %15 = vsyncadd [#allocation3], %s14
      %s17 = sshll.u32 [#allocation2], 4
      %s18 = int_to_ptr.vmem [resolvable:$true] %s17
      %20 = dma.hbm_to_vmem [thread:$0]  %s0, 256, %s18, [#allocation3]
    $region5: #{tpu_custom_call.1} parent=1 // pred_fallthru
      _
    // Predicated region
    $region6: #{tpu_custom_call.1} parent=1 // pred_check
      _
    $region7: #{tpu_custom_call.1} parent=1 // pred_check_branch
      %22 = sbr.rel (0) target = $region9
    $region8: #{tpu_custom_call.1} parent=1 // pred_region
      %s24 = ssub.s32 4096, 4096
      %25 = vsyncadd [#allocation6], %s24
      %s26 = sshll.u32 [#allocation5], 4
      %s27 = int_to_ptr.vmem [resolvable:$true] %s26
      %32 = dma.hbm_to_vmem [thread:$0]  %s1, 4096, %s27, [#allocation6], 128, 128, 8
    $region9: #{tpu_custom_call.1} parent=1 // pred_fallthru
      _
    // Predicated region
    $region10: #{tpu_custom_call.1} parent=1 // pred_check
      _
    $region11: #{tpu_custom_call.1} parent=1 // pred_check_branch
      %34 = sbr.rel (0) target = $region13
    $region12: #{tpu_custom_call.1} parent=1 // pred_region
      %s36 = ssub.s32 16, 16
      %37 = vsyncadd [#allocation6], %s36
      %s39 = sshll.u32 [#allocation7], 4
      %s40 = int_to_ptr.vmem [resolvable:$true] %s39
      %42 = dma.hbm_to_vmem [thread:$0]  %s2, 16, %s40, [#allocation6]
    $region13: #{tpu_custom_call.1} parent=1 // pred_fallthru
      _
    // Predicated region
    $region14: #{tpu_custom_call.1} parent=1 // pred_check
      _
    $region15: #{tpu_custom_call.1} parent=1 // pred_check_branch
      %44 = sbr.rel (0) target = $region17
    $region16: #{tpu_custom_call.1} parent=1 // pred_region
      %45 = dma.done [#allocation3], 256
    $region17: #{tpu_custom_call.1} parent=1 // pred_fallthru
      _
    // Predicated region
    $region18: #{tpu_custom_call.1} parent=1 // pred_check
      _
    $region19: #{tpu_custom_call.1} parent=1 // pred_check_branch
      %47 = sbr.rel (0) target = $region21
    $region20: #{tpu_custom_call.1} parent=1 // pred_region
      %48 = dma.done [#allocation6], 4096
    $region21: #{tpu_custom_call.1} parent=1 // pred_fallthru
      _
    // Predicated region
    $region22: #{tpu_custom_call.1} parent=1 // pred_check
      _
    $region23: #{tpu_custom_call.1} parent=1 // pred_check_branch
      %50 = sbr.rel (0) target = $region25
    $region24: #{tpu_custom_call.1} parent=1 // pred_region
      %51 = dma.done [#allocation6], 16
    $region25: #{tpu_custom_call.1} parent=1 // pred_fallthru
      _
    %v52 = vld [vmem:[#allocation2] sm:$0xff]
    %v53 = vld [vmem:[#allocation2 + $0x8] sm:$0xff]
    %v54 = vld [vmem:[#allocation5] sm:$0xff]
    %v55 = vld [vmem:[#allocation5 + $0x8] sm:$0xff]
    %v56 = vld [vmem:[#allocation5 + $0x10] sm:$0xff]
    %v57 = vld [vmem:[#allocation5 + $0x18] sm:$0xff]
    %v58 = vld [vmem:[#allocation5 + $0x20] sm:$0xff]
    %v59 = vld [vmem:[#allocation5 + $0x28] sm:$0xff]
    %v60 = vld [vmem:[#allocation5 + $0x30] sm:$0xff]
    %v61 = vld [vmem:[#allocation5 + $0x38] sm:$0xff]
    %v62 = vld [vmem:[#allocation5 + $0x40] sm:$0xff]
    %v63 = vld [vmem:[#allocation5 + $0x48] sm:$0xff]
    %v64 = vld [vmem:[#allocation5 + $0x50] sm:$0xff]
    %v65 = vld [vmem:[#allocation5 + $0x58] sm:$0xff]
    %v66 = vld [vmem:[#allocation5 + $0x60] sm:$0xff]
    %v67 = vld [vmem:[#allocation5 + $0x68] sm:$0xff]
    %v68 = vld [vmem:[#allocation5 + $0x70] sm:$0xff]
    %v69 = vld [vmem:[#allocation5 + $0x78] sm:$0xff]
    %v70 = vld [vmem:[#allocation5 + $0x80] sm:$0xff]
    %v71 = vld [vmem:[#allocation5 + $0x88] sm:$0xff]
    %v72 = vld [vmem:[#allocation5 + $0x90] sm:$0xff]
    %v73 = vld [vmem:[#allocation5 + $0x98] sm:$0xff]
    %v74 = vld [vmem:[#allocation5 + $0xa0] sm:$0xff]
    %v75 = vld [vmem:[#allocation5 + $0xa8] sm:$0xff]
    %v76 = vld [vmem:[#allocation5 + $0xb0] sm:$0xff]
    %v77 = vld [vmem:[#allocation5 + $0xb8] sm:$0xff]
    %v78 = vld [vmem:[#allocation5 + $0xc0] sm:$0xff]
    %v79 = vld [vmem:[#allocation5 + $0xc8] sm:$0xff]
    %v80 = vld [vmem:[#allocation5 + $0xd0] sm:$0xff]
    %v81 = vld [vmem:[#allocation5 + $0xd8] sm:$0xff]
    %v82 = vld [vmem:[#allocation5 + $0xe0] sm:$0xff]
    %v83 = vld [vmem:[#allocation5 + $0xe8] sm:$0xff]
    %v84 = vld [vmem:[#allocation5 + $0xf0] sm:$0xff]
    %v85 = vld [vmem:[#allocation5 + $0xf8] sm:$0xff]
    %v86 = vld [vmem:[#allocation7] sm:$0x1]
    %v88 = vlaneseq
    %v89 = vshrl.u32 %v88, 7
    %v90 = vsub.s32 0, %v89
    %v91 = vrot.slane %v86, %v90
    %93 = vmatprep.subr.mxu0 0.0
    %94 = vmatpush1.msra.mxu0 %v54
    %95 = vmatprep.subr.mxu0 0.0
    %96 = vmatpush1.msra.mxu0 %v55
    %97 = vmatprep.subr.mxu0 0.0
    %98 = vmatpush1.msra.mxu0 %v56
    %99 = vmatprep.subr.mxu0 0.0
    %100 = vmatpush1.msra.mxu0 %v57
    %101 = vmatprep.subr.mxu0 0.0
    %102 = vmatpush1.msra.mxu0 %v58
    %103 = vmatprep.subr.mxu0 0.0
    %104 = vmatpush1.msra.mxu0 %v59
    %105 = vmatprep.subr.mxu0 0.0
    %106 = vmatpush1.msra.mxu0 %v60
    %107 = vmatprep.subr.mxu0 0.0
    %108 = vmatpush1.msra.mxu0 %v61
    %109 = vmatprep.subr.mxu0 0.0
    %110 = vmatpush1.msra.mxu0 %v62
    %111 = vmatprep.subr.mxu0 0.0
    %112 = vmatpush1.msra.mxu0 %v63
    %113 = vmatprep.subr.mxu0 0.0
    %114 = vmatpush1.msra.mxu0 %v64
    %115 = vmatprep.subr.mxu0 0.0
    %116 = vmatpush1.msra.mxu0 %v65
    %117 = vmatprep.subr.mxu0 0.0
    %118 = vmatpush1.msra.mxu0 %v66
    %119 = vmatprep.subr.mxu0 0.0
    %120 = vmatpush1.msra.mxu0 %v67
    %121 = vmatprep.subr.mxu0 0.0
    %122 = vmatpush1.msra.mxu0 %v68
    %123 = vmatprep.subr.mxu0 0.0
    %124 = vmatpush1.msra.mxu0 %v69
    %125 = vmatprep.subr.mxu0 0.0
    %126 = vmatpush1.msra.mxu0 %v70
    %127 = vmatprep.subr.mxu0 0.0
    %128 = vmatpush1.msra.mxu0 %v71
    %129 = vmatprep.subr.mxu0 0.0
    %130 = vmatpush1.msra.mxu0 %v72
    %131 = vmatprep.subr.mxu0 0.0
    %132 = vmatpush1.msra.mxu0 %v73
    %133 = vmatprep.subr.mxu0 0.0
    %134 = vmatpush1.msra.mxu0 %v74
    %135 = vmatprep.subr.mxu0 0.0
    %136 = vmatpush1.msra.mxu0 %v75
    %137 = vmatprep.subr.mxu0 0.0
    %138 = vmatpush1.msra.mxu0 %v76
    %139 = vmatprep.subr.mxu0 0.0
    %140 = vmatpush1.msra.mxu0 %v77
    %141 = vmatprep.subr.mxu0 0.0
    %142 = vmatpush1.msra.mxu0 %v78
    %143 = vmatprep.subr.mxu0 0.0
    %144 = vmatpush1.msra.mxu0 %v79
    %145 = vmatprep.subr.mxu0 0.0
    %146 = vmatpush1.msra.mxu0 %v80
    %147 = vmatprep.subr.mxu0 0.0
    %148 = vmatpush1.msra.mxu0 %v81
    %149 = vmatprep.subr.mxu0 0.0
    %150 = vmatpush1.msra.mxu0 %v82
    %151 = vmatprep.subr.mxu0 0.0
    %152 = vmatpush1.msra.mxu0 %v83
    %153 = vmatprep.subr.mxu0 0.0
    %154 = vmatpush1.msra.mxu0 %v84
    %155 = vmatprep.subr.mxu0 0.0
    %156 = vmatpush1.msra.mxu0 %v85
    %157 = vmatprep.mubr.f32.mxu0 %v53
    %158 = vmatmul.mubr.f32.gmra.mrb[0].mxu0 %v52
    %v159 = vpop.f32.mrb[0].mxu0
    %v160 = vadd.f32 %v91, %v159
    %v161 = vpop.f32.mrb[0].mxu0
    %162 = vdwg.mxu0
    %163 = vst [vmem:[#allocation8] sm:$0xff] %v160
    // Predicated region
    $region26: #{tpu_custom_call.1} parent=1 // pred_check
      _
    $region27: #{tpu_custom_call.1} parent=1 // pred_check_branch
      %165 = sbr.rel (0) target = $region29
    $region28: #{tpu_custom_call.1} parent=1 // pred_region
      %s167 = ssub.s32 128, 128
      %168 = vsyncadd [#allocation4], %s167
      %s170 = sshll.u32 [#allocation8], 4
      %s171 = int_to_ptr.vmem [resolvable:$true] %s170
      %173 = dma.vmem_to_hbm [thread:$0]  %s171, 128, %s3, [#allocation4]
    $region29: #{tpu_custom_call.1} parent=1 // pred_fallthru
      _
    // Predicated region
    $region30: #{tpu_custom_call.1} parent=1 // pred_check
      _
    $region31: #{tpu_custom_call.1} parent=1 // pred_check_branch
      %175 = sbr.rel (0) target = $region33
    $region32: #{tpu_custom_call.1} parent=1 // pred_region
      %176 = dma.done [#allocation4], 128
    $region33: #{tpu_custom_call.1} parent=1 // pred_fallthru
      _
    %177 = vsyncpa [#allocation3], 1
    %178 = vsyncpa [#allocation6], 1
    %179 = vsyncpa [#allocation4], 1

</llo_original>
